<compile_context>
chip_gen: v5e
topology: v5e:2x2
jax: 0.10.0
libtpu: 0.0.40
codegen_flags: <defaults>
</compile_context>

<pallas_src>
import functools

import jax
import jax.numpy as jnp
from jax.experimental import pallas as pl
from jax.experimental.pallas import tpu as pltpu


def _nsp_kernel(x_ref, w_ref, b_ref, out_ref, *, hidden):
    # x_ref: (TB, LANE_BLK) -- the first `hidden` lanes are the CLS features
    # of each batch row (the rest, if any, is alignment padding we ignore).
    x_cls = x_ref[:, :hidden]                                   # (TB, H)

    # Linear: (TB, H) @ (H, 2) + (1, 2), accumulate in f32.
    logits = jnp.dot(x_cls, w_ref[...],
                     preferred_element_type=jnp.float32) + b_ref[...]

    # 2-class log-softmax, closed form (VPU/EUP only, no cross-lane reduce):
    #   lse = max(l0, l1) + log(1 + exp(-|l1 - l0|));  out = logits - lse
    l0 = logits[:, 0:1]
    l1 = logits[:, 1:2]
    m = jnp.maximum(l0, l1)
    lse = m + jnp.log(1.0 + jnp.exp(-jnp.abs(l1 - l0)))
    out_ref[...] = (logits - lse).astype(out_ref.dtype)


def next_sentence_prediction(x, weight, bias, *, block_b=1024):
    """NSP head: log_softmax(x[:, 0] @ weight + bias, axis=-1).

    x:      (B, S, H)  float32 or bfloat16 hidden states
    weight: (H, 2)     (transposed vs. torch Linear's (2, H))
    bias:   (2,)
    returns (B, 2) float32 log-probabilities.
    """
    B, S, H = x.shape

    # Free row-major collapse: CLS features of row b are columns [0, H).
    x2 = x.reshape(B, S * H)

    # Lane block: exactly H when H is a multiple of 128 (BERT 768/1024),
    # otherwise round up to the next multiple of 128 (or the full row when the
    # row itself is tiny).  Only this slab is DMA'd; the rest of the sequence
    # never leaves HBM.
    lane_blk = min(S * H, ((H + 127) // 128) * 128)

    # Batch tile: large for pipelining efficiency, but bounded so that the
    # double-buffered x tile (2 * TB * lane_blk * 4 bytes) stays well under
    # the scoped VMEM limit on every generation (v7x included).  TB=1024 with
    # H=1024 f32 is 4 MiB/buffer.
    if B <= block_b:
        tb = B                              # full-dim block is always legal
    else:
        tb = max(8, (block_b // 8) * 8)     # keep it a multiple of 8
    grid = (pl.cdiv(B, tb),)                # remainder tile is clipped by Pallas

    kernel = functools.partial(_nsp_kernel, hidden=H)
    return pl.pallas_call(
        kernel,
        out_shape=jax.ShapeDtypeStruct((B, 2), jnp.float32),
        grid=grid,
        in_specs=[
            # Per-tile CLS slab: rows [i*tb, (i+1)*tb), columns [0, lane_blk).
            pl.BlockSpec((tb, lane_blk), lambda i: (i, 0)),
            # Parameters: constant block index -> stay VMEM-resident.
            pl.BlockSpec((H, 2), lambda i: (0, 0)),
            pl.BlockSpec((1, 2), lambda i: (0, 0)),
        ],
        out_specs=pl.BlockSpec((tb, 2), lambda i: (i, 0)),
        compiler_params=pltpu.CompilerParams(
            dimension_semantics=("parallel",)),
    )(x2, weight, bias.reshape(1, 2))


if __name__ == "__main__":
    key = jax.random.PRNGKey(0)
    kx, kw, kb, kx2 = jax.random.split(key, 4)

    # Toy shapes consistent with the module: batch=2, seq=8, hidden=32.
    batch, seq, hidden = 2, 8, 32
    x = jax.random.normal(kx, (batch, seq, hidden), dtype=jnp.float32)
    weight = jax.random.normal(kw, (hidden, 2), dtype=jnp.float32) * 0.02
    bias = jax.random.normal(kb, (2,), dtype=jnp.float32) * 0.02

    out = jax.block_until_ready(next_sentence_prediction(x, weight, bias))
    ref = jax.nn.log_softmax(x[:, 0] @ weight + bias, axis=-1)
    assert out.shape == (batch, 2)
    assert jnp.allclose(out, ref, atol=1e-5, rtol=1e-5)

    # Also exercise the batch-tiled grid path (2 grid steps, resident params).
    batch2 = 16
    x_big = jax.random.normal(kx2, (batch2, seq, hidden), dtype=jnp.float32)
    out2 = jax.block_until_ready(
        next_sentence_prediction(x_big, weight, bias, block_b=8))
    ref2 = jax.nn.log_softmax(x_big[:, 0] @ weight + bias, axis=-1)
    assert out2.shape == (batch2, 2)
    assert jnp.allclose(out2, ref2, atol=1e-5, rtol=1e-5)

    print("KERNEL_OK")
</pallas_src>

<mosaic_0001>
module attributes {stable_mosaic.version = 11 : i64} {
  func.func @_nsp_kernel(%arg0: i32, %arg1: memref<2x128xf32, #tpu.memory_space<vmem>>, %arg2: memref<32x2xf32, #tpu.memory_space<vmem>>, %arg3: memref<1x2xf32, #tpu.memory_space<vmem>>, %arg4: memref<2x2xf32, #tpu.memory_space<vmem>>) attributes {dimension_semantics = [#tpu.dimension_semantics<parallel>], iteration_bounds = array<i64: 1>, scalar_prefetch = 0 : i64, scratch_operands = 0 : i64, tpu.core_type = #tpu.core_type<tc>, window_params = [{transform_indices = @transform_0, window_bounds = array<i64: 2, 128>}, {pipeline_mode = #tpu.pipeline_mode<synchronous>, transform_indices = @transform_1, window_bounds = array<i64: 32, 2>}, {pipeline_mode = #tpu.pipeline_mode<synchronous>, transform_indices = @transform_2, window_bounds = array<i64: 1, 2>}, {transform_indices = @transform_3, window_bounds = array<i64: 2, 2>}]} {
    %c0 = arith.constant 0 : index
    %c0_0 = arith.constant 0 : index
    %0 = vector.load %arg1[%c0, %c0_0] : memref<2x128xf32, #tpu.memory_space<vmem>>, vector<2x32xf32>
    %c0_1 = arith.constant 0 : index
    %c0_2 = arith.constant 0 : index
    %1 = vector.load %arg2[%c0_1, %c0_2] : memref<32x2xf32, #tpu.memory_space<vmem>>, vector<32x2xf32>
    %cst = arith.constant dense<0.000000e+00> : vector<2x2xf32>
    %2 = tpu.matmul %0, %1, %cst {dimension_numbers = #tpu.dot_dimension_numbers<[1], [0], [0], [1], [0, 0, 1, 1], [], []>} : vector<2x32xf32>, vector<32x2xf32>, vector<2x2xf32> -> vector<2x2xf32>
    %c0_3 = arith.constant 0 : index
    %c0_4 = arith.constant 0 : index
    %3 = vector.load %arg3[%c0_3, %c0_4] : memref<1x2xf32, #tpu.memory_space<vmem>>, vector<1x2xf32>
    %4 = vector.broadcast %3 : vector<1x2xf32> to vector<2x2xf32>
    %5 = arith.addf %2, %4 : vector<2x2xf32>
    %6 = vector.extract_strided_slice %5 {offsets = [0, 0], sizes = [2, 1], strides = [1, 1]} : vector<2x2xf32> to vector<2x1xf32>
    %7 = vector.extract_strided_slice %5 {offsets = [0, 1], sizes = [2, 1], strides = [1, 1]} : vector<2x2xf32> to vector<2x1xf32>
    %8 = arith.maximumf %6, %7 : vector<2x1xf32>
    %9 = arith.subf %7, %6 : vector<2x1xf32>
    %10 = math.absf %9 : vector<2x1xf32>
    %cst_5 = arith.constant 0.000000e+00 : f32
    %11 = vector.broadcast %cst_5 : f32 to vector<2x1xf32>
    %12 = arith.subf %11, %10 : vector<2x1xf32>
    %13 = math.exp %12 : vector<2x1xf32>
    %cst_6 = arith.constant 1.000000e+00 : f32
    %14 = vector.broadcast %cst_6 : f32 to vector<2x1xf32>
    %15 = arith.addf %14, %13 : vector<2x1xf32>
    %16 = math.log %15 : vector<2x1xf32>
    %17 = arith.addf %8, %16 : vector<2x1xf32>
    %18 = vector.broadcast %17 : vector<2x1xf32> to vector<2x2xf32>
    %19 = arith.subf %5, %18 : vector<2x2xf32>
    %c0_7 = arith.constant 0 : index
    %c0_8 = arith.constant 0 : index
    %20 = vector.load %arg4[%c0_7, %c0_8] : memref<2x2xf32, #tpu.memory_space<vmem>>, vector<2x2xf32>
    tpu.vector_store %arg4[%c0_7, %c0_8], %19 {strides = array<i32>} : memref<2x2xf32, #tpu.memory_space<vmem>>, vector<2x2xf32>,
    return
  }
  func.func @transform_0(%arg0: i32) -> (i32, i32) {
    %c0_i32 = arith.constant 0 : i32
    %c0_i32_0 = arith.constant 0 : i32
    return %arg0, %c0_i32 : i32, i32
  }
  func.func @transform_1(%arg0: i32) -> (i32, i32) {
    %c0_i32 = arith.constant 0 : i32
    %c0_i32_0 = arith.constant 0 : i32
    %c0_i32_1 = arith.constant 0 : i32
    return %c0_i32, %c0_i32_0 : i32, i32
  }
  func.func @transform_2(%arg0: i32) -> (i32, i32) {
    %c0_i32 = arith.constant 0 : i32
    %c0_i32_0 = arith.constant 0 : i32
    %c0_i32_1 = arith.constant 0 : i32
    return %c0_i32, %c0_i32_0 : i32, i32
  }
  func.func @transform_3(%arg0: i32) -> (i32, i32) {
    %c0_i32 = arith.constant 0 : i32
    %c0_i32_0 = arith.constant 0 : i32
    return %arg0, %c0_i32 : i32, i32
  }
}

</mosaic_0001>

<llo_original>
// kernel: tpu_custom_call.1
$region0: #{tpu_custom_call.1}
  #allocation0 [shape = 'u32[]', space=smem, size = 0x4, offset = 0x4, fixed_abs, tag = 'smem constant byte address 0x4 - core index']
  #allocation1 [shape = 'u32[72,128]{1,0:T(1,128)}', space=vmem, size = 0x9000, scoped, tag = 'internal scratch']
  %s0 = inlined_call_operand.vmem [shape: f32[2,256], index: 0, kind: input, shape index: {}]
  %s1 = inlined_call_operand.vmem [shape: f32[32,2], index: 1, kind: input, shape index: {}]
  %s2 = inlined_call_operand.vmem [shape: f32[1,2], index: 2, kind: input, shape index: {}]
  %s3 = inlined_call_operand.hbm [shape: f32[2,2], index: 3, kind: output, shape index: {}]
  %s4 = sld [smem:[#allocation0]]
  $region22: #{tpu_custom_call.1} parent=0
    _
  %s6 = ssub.s32 1, %s4
  %s7 = scalar_select 0, %s6, %s4
  $region1: #{tpu_custom_call.1} parent=0
    #allocation2 [shape = 'u8[1024]{0}', space=vmem, size = 0x400, scoped, tag = 'output window, operand 0, single buffered']
    #allocation3 [shape = 's32[1]{0}', space=sflag, size = 0x4, scoped, tag = 'scoped memory for tpu_custom_call.1']
    %8 = vsyncpa [#allocation3], 0
    // Predicated region
    $region2: #{tpu_custom_call.1} parent=1 // pred_check
      _
    $region3: #{tpu_custom_call.1} parent=1 // pred_check_branch
      %10 = sbr.rel (0) target = $region5
    $region4: #{tpu_custom_call.1} parent=1 // pred_region
      _
    $region5: #{tpu_custom_call.1} parent=1 // pred_fallthru
      _
    // Predicated region
    $region6: #{tpu_custom_call.1} parent=1 // pred_check
      _
    $region7: #{tpu_custom_call.1} parent=1 // pred_check_branch
      %12 = sbr.rel (0) target = $region9
    $region8: #{tpu_custom_call.1} parent=1 // pred_region
      _
    $region9: #{tpu_custom_call.1} parent=1 // pred_fallthru
      _
    // Predicated region
    $region10: #{tpu_custom_call.1} parent=1 // pred_check
      _
    $region11: #{tpu_custom_call.1} parent=1 // pred_check_branch
      %14 = sbr.rel (0) target = $region13
    $region12: #{tpu_custom_call.1} parent=1 // pred_region
      _
    $region13: #{tpu_custom_call.1} parent=1 // pred_fallthru
      _
    %v15 = vld [vmem:[%s0] sm:$0x3]
    %v16 = vld [vmem:[%s1] sm:$0xff]
    %v17 = vld [vmem:[%s1 + $0x8] sm:$0xff]
    %v18 = vld [vmem:[%s1 + $0x10] sm:$0xff]
    %v19 = vld [vmem:[%s1 + $0x18] sm:$0xff]
    %v20 = vld [vmem:[%s2] sm:$0x1]
    %v22 = vperm.slane %v20, 0
    %vm24 = vcmask 261120
    %v26 = vsel %vm24, %v15, 0
    %28 = vmatpush.msra.mxu0 0.0
    %29 = vmatpush.msra.mxu0 0.0
    %30 = vmatpush.msra.mxu0 0.0
    %31 = vmatpush.msra.mxu0 0.0
    %32 = vmatpush.msra.mxu0 0.0
    %33 = vmatpush.msra.mxu0 0.0
    %34 = vmatpush.msra.mxu0 0.0
    %35 = vmatpush.msra.mxu0 0.0
    %36 = vmatpush.msra.mxu0 0.0
    %37 = vmatpush.msra.mxu0 0.0
    %38 = vmatpush.msra.mxu0 0.0
    %39 = vmatpush.msra.mxu0 0.0
    %40 = vmatpush.msra.mxu0 %v19
    %41 = vmatpush.msra.mxu0 %v18
    %42 = vmatpush.msra.mxu0 %v17
    %43 = vmatpush.msra.mxu0 %v16
    %44 = vmatmul.f32.gmra.mxu0 %v26
    %v45 = vpop.f32.mrf.mxu0
    %v46 = vadd.f32 %v22, %v45
    %47 = vdwg.mxu0
    %49 = vrot.lane.b32.xlu0 %v46, 127
    %v50 = vpop.permute.xlu0 %49
    %v52 = vmax.f32 %v46, %v50
    %53 = vrot.lane.b32.xlu0 %v46, 1
    %v54 = vpop.permute.xlu0 %53
    %v56 = vsub.f32 %v46, %v54
    %v57 = vand.u32 2147483647, %v56
    %v58 = vsub.f32 0.0, %v57
    %v59 = vmul.f32 %v58, 1.442695
    %v60 = vpow.pop %v59
    %v61 = vadd.f32 %v60, 1.0
    %v62 = vlog2.pop %v61
    %v63 = vmul.f32 %v62, 0.6931472
    %65 = vrot.lane.b32.xlu0 %v63, 127
    %v66 = vpop.permute.xlu0 %65
    %v68 = vadd.f32 %v52, %v66
    %70 = vset.pattern.permute.xlu0 0
    %71 = vperm.xlu0 %70, %v68
    %v72 = vpop.permute.xlu0 %71
    %v74 = vsub.f32 %v46, %v72
    %vm75 = vcmask 9216
    %76 = vst.msk [vmem:[#allocation2] sm:$0x3] %vm75, %v74
    // Predicated region
    $region14: #{tpu_custom_call.1} parent=1 // pred_check
      _
    $region15: #{tpu_custom_call.1} parent=1 // pred_check_branch
      %78 = sbr.rel (0) target = $region17
    $region16: #{tpu_custom_call.1} parent=1 // pred_region
      %80 = vsyncadd [#allocation3], 0
      %s82 = sshll.u32 [#allocation2], 4
      %s83 = int_to_ptr.vmem [resolvable:$true] %s82
      %s84 = sshll.u32 %s3, 4
      %s85 = int_to_ptr.hbm [resolvable:$true] %s84
      %87 = dma.vmem_to_hbm [thread:$0]  %s83, 32, %s85, [#allocation3]
    $region17: #{tpu_custom_call.1} parent=1 // pred_fallthru
      _
    // Predicated region
    $region18: #{tpu_custom_call.1} parent=1 // pred_check
      _
    $region19: #{tpu_custom_call.1} parent=1 // pred_check_branch
      %89 = sbr.rel (0) target = $region21
    $region20: #{tpu_custom_call.1} parent=1 // pred_region
      %91 = dma.done [#allocation3], 32
    $region21: #{tpu_custom_call.1} parent=1 // pred_fallthru
      _
    %92 = vsyncpa [#allocation3], 1

</llo_original>
